<compile_context>
chip_gen: v7x
topology: tpu7x:2x2x1
jax: 0.10.0
libtpu: 0.0.40
codegen_flags: <defaults>
</compile_context>

<pallas_src>
import functools

import jax
import jax.numpy as jnp
from jax.experimental import pallas as pl
from jax.experimental.pallas import tpu as pltpu


def _round_up(x, m):
    return ((x + m - 1) // m) * m


def _fast_mish(y):
    # mish(y) = y * tanh(softplus(y)) = y * (1 - 2 / ((1 + e^y)^2 + 1))
    # Single EUP exp + single EUP approx reciprocal; for y -> +inf the
    # denominator -> inf so the factor -> 1 (correct limit), for y -> -inf
    # the factor -> ~e^y (correct limit).
    e = jnp.exp(y)
    denom = (1.0 + e) * (1.0 + e) + 1.0
    t = 1.0 - 2.0 * pl.reciprocal(denom, approx=True)
    return y * t


def _fused_ffn_kernel(x_ref, w_ref, b_ref, o_ref, *, n_dense, last_act, leaky_slope):
    """Applies all n_dense (linear + activation) layers to one (tm, Dp) row tile.

    x_ref: (tm, Dp)   w_ref: (n_dense, Dp, Dp)   b_ref: (n_dense, 1, Dp)
    """
    x = x_ref[...]                     # native dtype -> fed straight to the MXU
    mxu_dtype = x_ref.dtype            # inter-layer operand dtype (bf16 stays bf16)
    y = None
    for l in range(n_dense):           # static unroll; n_dense is small
        w = w_ref[l]                   # (Dp, Dp), resident in VMEM
        b = b_ref[l]                   # (1, Dp)
        y = jnp.dot(x, w, preferred_element_type=jnp.float32) + b.astype(jnp.float32)
        if l < n_dense - 1:
            y = _fast_mish(y)          # hidden layers: mish
            x = y.astype(mxu_dtype)
        else:
            if last_act == "leaky_relu":
                y = jnp.where(y >= 0.0, y, leaky_slope * y)
            elif last_act == "tanh":
                y = jnp.tanh(y)
            elif last_act == "none":
                pass
            else:
                raise ValueError(f"unknown output activation {last_act}")
    o_ref[...] = y.astype(o_ref.dtype)


def positionwise_feed_forward(node_hidden, weights, biases, *,
                              leaky_relu_slope=0.1,
                              dense_output_nonlinearity="relu",
                              tm_max=256):
    """JAX/Pallas forward of PositionwiseFeedForward (dropout = identity / eval).

    node_hidden: (B, S, D); weights[i]: (D_in, D_out) pre-transposed; biases[i]: (1, D).
    """
    n_dense = len(weights)
    if n_dense == 0:
        return node_hidden

    if dense_output_nonlinearity == "relu":
        last_act = "leaky_relu"          # F.leaky_relu(x, negative_slope=slope)
    elif dense_output_nonlinearity == "tanh":
        last_act = "tanh"
    elif dense_output_nonlinearity == "none":
        last_act = "none"
    else:
        raise ValueError(
            f"unsupported dense_output_nonlinearity: {dense_output_nonlinearity!r}")

    B, S, D = node_hidden.shape
    M = B * S
    x2d = node_hidden.reshape(M, D)

    # Lane-dense feature dim: pad D to a multiple of 128. Zero padding is exact:
    # padded weight rows/cols and bias lanes are 0, and mish/leaky_relu/tanh all
    # map 0 -> 0, so padded lanes stay 0 through every layer.
    D_pad = _round_up(max(D, 128), 128)

    # Row tile: large enough to amortize per-step overhead, small enough to give
    # >= 2 grid steps when M allows (so v7x megacore shards the grid).
    tm = min(tm_max, _round_up(M, 8))
    if 8 < M <= tm:
        tm = _round_up(-(-M // 2), 8)
    M_pad = _round_up(M, tm)

    if (M_pad, D_pad) != (M, D):
        x2d = jnp.pad(x2d, ((0, M_pad - M), (0, D_pad - D)))

    def _pad_w(w):
        return jnp.pad(w, ((0, D_pad - D), (0, D_pad - D))) if D_pad != D else w

    def _pad_b(b):
        b = b.reshape(1, D)
        return jnp.pad(b, ((0, 0), (0, D_pad - D))) if D_pad != D else b

    w_stack = jnp.stack([_pad_w(w) for w in weights])   # (n_dense, Dp, Dp)
    b_stack = jnp.stack([_pad_b(b) for b in biases])    # (n_dense, 1, Dp)

    # Explicit VMEM budget (weights double-buffered blocks + in/out tiles + f32
    # temps), capped at 64 MiB so the same plan is safe on v7x's smaller VMEM.
    act_isz = jnp.dtype(x2d.dtype).itemsize
    w_isz = jnp.dtype(w_stack.dtype).itemsize
    vmem_bytes = (
        2 * n_dense * D_pad * D_pad * w_isz      # resident stacked weights
        + 2 * n_dense * D_pad * w_isz            # biases
        + 2 * 2 * tm * D_pad * act_isz           # double-buffered in/out row tiles
        + 6 * tm * D_pad * 4                     # f32 temporaries headroom
    )
    vmem_limit = int(min(64 * 2 ** 20, max(2 * vmem_bytes, 16 * 2 ** 20)))

    kernel = functools.partial(
        _fused_ffn_kernel, n_dense=n_dense, last_act=last_act,
        leaky_slope=leaky_relu_slope)

    out = pl.pallas_call(
        kernel,
        out_shape=jax.ShapeDtypeStruct((M_pad, D_pad), node_hidden.dtype),
        grid_spec=pltpu.PrefetchScalarGridSpec(
            num_scalar_prefetch=0,
            grid=(M_pad // tm,),
            in_specs=[
                pl.BlockSpec((tm, D_pad), lambda i: (i, 0)),                 # row tile
                pl.BlockSpec((n_dense, D_pad, D_pad), lambda i: (0, 0, 0)),  # all weights (constant block -> fetched once)
                pl.BlockSpec((n_dense, 1, D_pad), lambda i: (0, 0, 0)),      # all biases
            ],
            out_specs=pl.BlockSpec((tm, D_pad), lambda i: (i, 0)),
        ),
        compiler_params=pltpu.CompilerParams(
            dimension_semantics=("parallel",),
            vmem_limit_bytes=vmem_limit,
        ),
    )(x2d, w_stack, b_stack)

    return out[:M, :D].reshape(B, S, D)


def _reference(node_hidden, weights, biases, leaky_relu_slope=0.1,
               dense_output_nonlinearity="relu"):
    """Pure-JAX reference of the same forward (exact mish) for a sanity check."""
    x = node_hidden.astype(jnp.float32)
    n = len(weights)
    for i in range(n - 1):
        y = jnp.einsum("bsd,de->bse", x, weights[i].astype(jnp.float32)) \
            + biases[i].reshape(-1).astype(jnp.float32)
        x = y * jnp.tanh(jax.nn.softplus(y))
    y = jnp.einsum("bsd,de->bse", x, weights[-1].astype(jnp.float32)) \
        + biases[-1].reshape(-1).astype(jnp.float32)
    if dense_output_nonlinearity == "relu":
        return jnp.where(y >= 0, y, leaky_relu_slope * y)
    if dense_output_nonlinearity == "tanh":
        return jnp.tanh(y)
    return y


if __name__ == "__main__":
    # Small shapes consistent with the module: (batch, seq, d_model)
    B, S, D = 2, 8, 32
    N_DENSE = 2

    key = jax.random.PRNGKey(0)
    k_x, *k_params = jax.random.split(key, 1 + 2 * N_DENSE)

    node_hidden = jax.random.normal(k_x, (B, S, D), dtype=jnp.float32)

    # nn.Linear(d_model, d_model) params; stored pre-transposed as (D_in, D_out).
    weights, biases = [], []
    for i in range(N_DENSE):
        w = jax.random.normal(k_params[2 * i], (D, D), dtype=jnp.float32) * (1.0 / jnp.sqrt(D))
        b = jax.random.normal(k_params[2 * i + 1], (1, D), dtype=jnp.float32) * 0.02
        weights.append(w)
        biases.append(b)

    out = positionwise_feed_forward(node_hidden, weights, biases,
                                    leaky_relu_slope=0.1,
                                    dense_output_nonlinearity="relu")
    out = jax.block_until_ready(out)

    ref = _reference(node_hidden, weights, biases)
    assert out.shape == (B, S, D)
    # Tolerance loosened vs exact math: hidden-layer mish uses the EUP approx
    # reciprocal (pl.reciprocal(approx=True)).
    assert jnp.allclose(out, ref, atol=1e-2, rtol=1e-2), "mismatch vs reference"

    print("KERNEL_OK")
</pallas_src>

<mosaic_0001>
module attributes {stable_mosaic.version = 11 : i64} {
  func.func @_fused_ffn_kernel(%arg0: i32, %arg1: memref<8x128xf32, #tpu.memory_space<vmem>>, %arg2: memref<2x128x128xf32, #tpu.memory_space<vmem>>, %arg3: memref<2x1x128xf32, #tpu.memory_space<vmem>>, %arg4: memref<8x128xf32, #tpu.memory_space<vmem>>) attributes {dimension_semantics = [#tpu.dimension_semantics<parallel>], iteration_bounds = array<i64: 2>, scalar_prefetch = 0 : i64, scratch_operands = 0 : i64, tpu.core_type = #tpu.core_type<tc>, window_params = [{transform_indices = @transform_0, window_bounds = array<i64: 8, 128>}, {pipeline_mode = #tpu.pipeline_mode<synchronous>, transform_indices = @transform_1, window_bounds = array<i64: 2, 128, 128>}, {pipeline_mode = #tpu.pipeline_mode<synchronous>, transform_indices = @transform_2, window_bounds = array<i64: 2, 1, 128>}, {transform_indices = @transform_3, window_bounds = array<i64: 8, 128>}]} {
    %c0 = arith.constant 0 : index
    %c0_0 = arith.constant 0 : index
    %0 = vector.load %arg1[%c0, %c0_0] : memref<8x128xf32, #tpu.memory_space<vmem>>, vector<8x128xf32>
    %c0_1 = arith.constant 0 : index
    %c0_2 = arith.constant 0 : index
    %c0_3 = arith.constant 0 : index
    %1 = vector.load %arg2[%c0_1, %c0_2, %c0_3] : memref<2x128x128xf32, #tpu.memory_space<vmem>>, vector<1x128x128xf32>
    %2 = vector.shape_cast %1 : vector<1x128x128xf32> to vector<128x128xf32>
    %c0_4 = arith.constant 0 : index
    %c0_5 = arith.constant 0 : index
    %c0_6 = arith.constant 0 : index
    %3 = vector.load %arg3[%c0_4, %c0_5, %c0_6] : memref<2x1x128xf32, #tpu.memory_space<vmem>>, vector<1x1x128xf32>
    %4 = vector.shape_cast %3 : vector<1x1x128xf32> to vector<1x128xf32>
    %cst = arith.constant dense<0.000000e+00> : vector<8x128xf32>
    %5 = tpu.matmul %0, %2, %cst {dimension_numbers = #tpu.dot_dimension_numbers<[1], [0], [0], [1], [0, 0, 1, 1], [], []>} : vector<8x128xf32>, vector<128x128xf32>, vector<8x128xf32> -> vector<8x128xf32>
    %6 = vector.broadcast %4 : vector<1x128xf32> to vector<8x128xf32>
    %7 = arith.addf %5, %6 : vector<8x128xf32>
    %8 = math.exp %7 : vector<8x128xf32>
    %cst_7 = arith.constant 1.000000e+00 : f32
    %9 = vector.broadcast %cst_7 : f32 to vector<8x128xf32>
    %10 = arith.addf %9, %8 : vector<8x128xf32>
    %cst_8 = arith.constant 1.000000e+00 : f32
    %11 = vector.broadcast %cst_8 : f32 to vector<8x128xf32>
    %12 = arith.addf %11, %8 : vector<8x128xf32>
    %13 = arith.mulf %10, %12 : vector<8x128xf32>
    %cst_9 = arith.constant 1.000000e+00 : f32
    %14 = vector.broadcast %cst_9 : f32 to vector<8x128xf32>
    %15 = arith.addf %13, %14 : vector<8x128xf32>
    %16 = tpu.reciprocal %15 {approx = true} : vector<8x128xf32> -> vector<8x128xf32>
    %cst_10 = arith.constant 2.000000e+00 : f32
    %17 = vector.broadcast %cst_10 : f32 to vector<8x128xf32>
    %18 = arith.mulf %17, %16 : vector<8x128xf32>
    %cst_11 = arith.constant 1.000000e+00 : f32
    %19 = vector.broadcast %cst_11 : f32 to vector<8x128xf32>
    %20 = arith.subf %19, %18 : vector<8x128xf32>
    %21 = arith.mulf %7, %20 : vector<8x128xf32>
    %c1 = arith.constant 1 : index
    %c0_12 = arith.constant 0 : index
    %c0_13 = arith.constant 0 : index
    %22 = vector.load %arg2[%c1, %c0_12, %c0_13] : memref<2x128x128xf32, #tpu.memory_space<vmem>>, vector<1x128x128xf32>
    %23 = vector.shape_cast %22 : vector<1x128x128xf32> to vector<128x128xf32>
    %c1_14 = arith.constant 1 : index
    %c0_15 = arith.constant 0 : index
    %c0_16 = arith.constant 0 : index
    %24 = vector.load %arg3[%c1_14, %c0_15, %c0_16] : memref<2x1x128xf32, #tpu.memory_space<vmem>>, vector<1x1x128xf32>
    %25 = vector.shape_cast %24 : vector<1x1x128xf32> to vector<1x128xf32>
    %cst_17 = arith.constant dense<0.000000e+00> : vector<8x128xf32>
    %26 = tpu.matmul %21, %23, %cst_17 {dimension_numbers = #tpu.dot_dimension_numbers<[1], [0], [0], [1], [0, 0, 1, 1], [], []>} : vector<8x128xf32>, vector<128x128xf32>, vector<8x128xf32> -> vector<8x128xf32>
    %27 = vector.broadcast %25 : vector<1x128xf32> to vector<8x128xf32>
    %28 = arith.addf %26, %27 : vector<8x128xf32>
    %cst_18 = arith.constant 0.000000e+00 : f32
    %29 = vector.broadcast %cst_18 : f32 to vector<8x128xf32>
    %30 = arith.cmpf oge, %28, %29 : vector<8x128xf32>
    %cst_19 = arith.constant 1.000000e-01 : f32
    %31 = vector.broadcast %cst_19 : f32 to vector<8x128xf32>
    %32 = arith.mulf %31, %28 : vector<8x128xf32>
    %33 = arith.select %30, %28, %32 : vector<8x128xi1>, vector<8x128xf32>
    %c0_20 = arith.constant 0 : index
    %c0_21 = arith.constant 0 : index
    %34 = vector.load %arg4[%c0_20, %c0_21] : memref<8x128xf32, #tpu.memory_space<vmem>>, vector<8x128xf32>
    tpu.vector_store %arg4[%c0_20, %c0_21], %33 {strides = array<i32>} : memref<8x128xf32, #tpu.memory_space<vmem>>, vector<8x128xf32>,
    return
  }
  func.func @transform_0(%arg0: i32) -> (i32, i32) {
    %c0_i32 = arith.constant 0 : i32
    %c0_i32_0 = arith.constant 0 : i32
    return %arg0, %c0_i32 : i32, i32
  }
  func.func @transform_1(%arg0: i32) -> (i32, i32, i32) {
    %c0_i32 = arith.constant 0 : i32
    %c0_i32_0 = arith.constant 0 : i32
    %c0_i32_1 = arith.constant 0 : i32
    %c0_i32_2 = arith.constant 0 : i32
    return %c0_i32, %c0_i32_0, %c0_i32_1 : i32, i32, i32
  }
  func.func @transform_2(%arg0: i32) -> (i32, i32, i32) {
    %c0_i32 = arith.constant 0 : i32
    %c0_i32_0 = arith.constant 0 : i32
    %c0_i32_1 = arith.constant 0 : i32
    %c0_i32_2 = arith.constant 0 : i32
    return %c0_i32, %c0_i32_0, %c0_i32_1 : i32, i32, i32
  }
  func.func @transform_3(%arg0: i32) -> (i32, i32) {
    %c0_i32 = arith.constant 0 : i32
    %c0_i32_0 = arith.constant 0 : i32
    return %arg0, %c0_i32 : i32, i32
  }
}

</mosaic_0001>

<llo_original>
// kernel: tpu_custom_call.1
$region0: #{tpu_custom_call.1}
  #allocation0 [shape = 'u32[]', space=smem, size = 0x4, offset = 0x4, fixed_abs, tag = 'smem constant byte address 0x4 - core index']
  #allocation1 [shape = 'u32[144,128]{1,0:T(1,128)}', space=vmem, size = 0x12000, scoped, tag = 'internal scratch']
  %s0 = inlined_call_operand.hbm [shape: f32[16,128], index: 0, kind: input, shape index: {}]
  %s1 = inlined_call_operand.hbm [shape: f32[2,128,128], index: 1, kind: input, shape index: {}]
  %s2 = inlined_call_operand.vmem [shape: f32[2,1,128], index: 2, kind: input, shape index: {}]
  %s3 = inlined_call_operand.hbm [shape: f32[16,128], index: 3, kind: output, shape index: {}]
  %s4 = sld [smem:[#allocation0]]
  $region53: #{tpu_custom_call.1} parent=0
    _
  %s6 = ssub.s32 1, %s4
  %s7 = scalar_select 0, %s6, %s4
  $region1: #{tpu_custom_call.1} parent=0
    #allocation2 [shape = 'u8[8192]{0}', space=vmem, size = 0x2000, scoped, tag = 'input window, operand 0']
    #allocation3 [shape = 's32[2]{0}', space=sflag, size = 0x8, scoped, tag = 'scoped memory for tpu_custom_call.1']
    #allocation4 [shape = 's32[2]{0}', space=sflag, size = 0x8, scoped, tag = 'scoped memory for tpu_custom_call.1']
    #allocation5 [shape = 'u8[131072]{0}', space=vmem, size = 0x20000, scoped, tag = 'input window, operand 1, single buffered']
    #allocation6 [shape = 's32[1]{0}', space=sflag, size = 0x4, scoped, tag = 'scoped memory for tpu_custom_call.1']
    #allocation7 [shape = 'u8[8192]{0}', space=vmem, size = 0x2000, scoped, tag = 'output window, operand 0']
    %8 = vsyncpa [#allocation3], 0
    %s9 = scalar_lea.sflag [#allocation3], 1
    %10 = vsyncpa %s9, 0
    %11 = vsyncpa [#allocation6], 0
    %12 = vsyncpa [#allocation4], 0
    %s13 = scalar_lea.sflag [#allocation4], 1
    %14 = vsyncpa %s13, 0
    loop: start=0, step=1, limit=4
    $region2: #{tpu_custom_call.1} parent=1 // loop_pre_header
      _
    $region3: #{tpu_custom_call.1} parent=1 // loop_header
      %s16 = sphi 0, %s20
      %p17 = scmp.ge.s32.totalorder %s16, 4
      %s26 = sphi 0, %s28
      %s29 = sphi 0, %s26
      %s30 = sphi 0, %s29
      %s46 = sphi 0, %s30
      %s50 = sphi 0, %s50
      %s52 = sphi 0, %s50
      %s53 = sphi 0, %s52
      %s67 = sphi 0, %s53
      %s71 = sphi 0, %s71
      %s73 = sphi 0, %s71
      %s74 = sphi 0, %s73
      %s88 = sphi 0, %s74
      %s94 = sphi 0, %s96
      %s97 = sphi 0, %s94
      %s98 = sphi 0, %s97
      %s114 = sphi 0, %s98
    $region4: #{tpu_custom_call.1} parent=1 // loop_header_branch
      %19 = sbr.rel (%p17) target = $region8
    $region5: #{tpu_custom_call.1} parent=1 // loop_body
      %s21 = ssub.s32 %s16, 1
      %s22 = ssub.s32 %s16, 2
      %s23 = sadd.s32 %s16, 1
      %s24 = ssub.s32 %s16, %s23
      %p25 = scmp.eq.s32.totalorder %s24, 0
      %s27 = sadd.s32 %s26, 1
      %s28 = scalar_select %p25, %s26, %s27
      %p31 = pneg %p25
      %p32 = scmp.eq.s32.totalorder %s16, 1
      %p33 = por %p31, %p32
      %p34 = scmp.ne.s32.totalorder %s26, %s29
      %p35 = scmp.eq.s32.totalorder %s16, 0
      %p36 = por %p34, %p35
      %p37 = scmp.ne.s32.totalorder %s26, %s29
      %p38 = scmp.eq.s32.totalorder %s21, 1
      %p39 = por %p37, %p38
      %p40 = scmp.ne.s32.totalorder %s29, %s30
      %p41 = scmp.eq.s32.totalorder %s21, 0
      %p42 = por %p40, %p41
      %p43 = scmp.ne.s32.totalorder %s29, %s30
      %p44 = scmp.eq.s32.totalorder %s22, 1
      %p45 = por %p43, %p44
      %p47 = scmp.ne.s32.totalorder %s30, %s46
      %p48 = scmp.eq.s32.totalorder %s22, 0
      %p49 = por %p47, %p48
      %s51 = sadd.s32 %s50, 1
      %p54 = scmp.eq.s32.totalorder %s16, 1
      %p55 = scmp.ne.s32.totalorder %s50, %s52
      %p56 = scmp.eq.s32.totalorder %s16, 0
      %p57 = por %p55, %p56
      %p58 = scmp.ne.s32.totalorder %s50, %s52
      %p59 = scmp.eq.s32.totalorder %s21, 1
      %p60 = por %p58, %p59
      %p61 = scmp.ne.s32.totalorder %s52, %s53
      %p62 = scmp.eq.s32.totalorder %s21, 0
      %p63 = por %p61, %p62
      %p64 = scmp.ne.s32.totalorder %s52, %s53
      %p65 = scmp.eq.s32.totalorder %s22, 1
      %p66 = por %p64, %p65
      %p68 = scmp.ne.s32.totalorder %s53, %s67
      %p69 = scmp.eq.s32.totalorder %s22, 0
      %p70 = por %p68, %p69
      %s72 = sadd.s32 %s71, 1
      %p75 = scmp.eq.s32.totalorder %s16, 1
      %p76 = scmp.ne.s32.totalorder %s71, %s73
      %p77 = scmp.eq.s32.totalorder %s16, 0
      %p78 = por %p76, %p77
      %p79 = scmp.ne.s32.totalorder %s71, %s73
      %p80 = scmp.eq.s32.totalorder %s21, 1
      %p81 = por %p79, %p80
      %p82 = scmp.ne.s32.totalorder %s73, %s74
      %p83 = scmp.eq.s32.totalorder %s21, 0
      %p84 = por %p82, %p83
      %p85 = scmp.ne.s32.totalorder %s73, %s74
      %p86 = scmp.eq.s32.totalorder %s22, 1
      %p87 = por %p85, %p86
      %p89 = scmp.ne.s32.totalorder %s74, %s88
      %p90 = scmp.eq.s32.totalorder %s22, 0
      %p91 = por %p89, %p90
      %s92 = ssub.s32 %s16, %s23
      %p93 = scmp.eq.s32.totalorder %s92, 0
      %s95 = sadd.s32 %s94, 1
      %s96 = scalar_select %p93, %s94, %s95
      %p99 = pneg %p93
      %p100 = scmp.eq.s32.totalorder %s16, 1
      %p101 = por %p99, %p100
      %p102 = scmp.ne.s32.totalorder %s94, %s97
      %p103 = scmp.eq.s32.totalorder %s16, 0
      %p104 = por %p102, %p103
      %p105 = scmp.ne.s32.totalorder %s94, %s97
      %p106 = scmp.eq.s32.totalorder %s21, 1
      %p107 = por %p105, %p106
      %p108 = scmp.ne.s32.totalorder %s97, %s98
      %p109 = scmp.eq.s32.totalorder %s21, 0
      %p110 = por %p108, %p109
      %p111 = scmp.ne.s32.totalorder %s97, %s98
      %p112 = scmp.eq.s32.totalorder %s22, 1
      %p113 = por %p111, %p112
      %p115 = scmp.ne.s32.totalorder %s98, %s114
      %p116 = scmp.eq.s32.totalorder %s22, 0
      %p117 = por %p115, %p116
      %p118 = scmp.le.s32.totalorder 1, %s16
      %p119 = scmp.lt.s32.totalorder %s16, 3
      %p120 = pnand %p118, %p119
      %p121 = pneg %p120
      // Predicated region
      $region9: #{tpu_custom_call.1} parent=5 // pred_check
        _
      $region10: #{tpu_custom_call.1} parent=5 // pred_check_branch
        %123 = sbr.rel (%p120) target = $region12
      $region11: #{tpu_custom_call.1} parent=5 // pred_region
        %s124 = ssub.s32 %s16, 1
        // Predicated region
        $region13: #{tpu_custom_call.1} parent=11 // pred_check
          %p125 = pneg %p63
        $region14: #{tpu_custom_call.1} parent=11 // pred_check_branch
          %127 = sbr.rel (%p125) target = $region16
        $region15: #{tpu_custom_call.1} parent=11 // pred_region
          %s129 = ssub.s32 4096, 4096
          %130 = vsyncadd [#allocation6], %s129
          %s131 = sshll.u32 [#allocation5], 4
          %s132 = int_to_ptr.vmem [resolvable:$true] %s131
          %137 = dma.hbm_to_vmem [thread:$0]  %s1, 4096, %s132, [#allocation6], 128, 128, 8
        $region16: #{tpu_custom_call.1} parent=11 // pred_fallthru
          _
        // Predicated region
        $region17: #{tpu_custom_call.1} parent=11 // pred_check
          %p138 = pneg %p84
        $region18: #{tpu_custom_call.1} parent=11 // pred_check_branch
          %140 = sbr.rel (%p138) target = $region20
        $region19: #{tpu_custom_call.1} parent=11 // pred_region
          _
        $region20: #{tpu_custom_call.1} parent=11 // pred_fallthru
          _
      $region12: #{tpu_custom_call.1} parent=5 // pred_fallthru
        _
      %p141 = scmp.lt.s32.totalorder %s16, 2
      // Predicated region
      $region21: #{tpu_custom_call.1} parent=5 // pred_check
        %p142 = pneg %p141
      $region22: #{tpu_custom_call.1} parent=5 // pred_check_branch
        %144 = sbr.rel (%p142) target = $region24
      $region23: #{tpu_custom_call.1} parent=5 // pred_region
        // Predicated region
        $region25: #{tpu_custom_call.1} parent=23 // pred_check
          %p145 = pneg %p36
        $region26: #{tpu_custom_call.1} parent=23 // pred_check_branch
          %147 = sbr.rel (%p145) target = $region28
        $region27: #{tpu_custom_call.1} parent=23 // pred_region
          %s148 = sand.u32 %s26, 1
          %s149 = scalar_lea.sflag [#allocation3], %s148
          %s150 = sand.u32 %s26, 1
          %s151 = smul.addr %s150, 8
          %s152 = scalar_lea.vmem [#allocation2], %s151
          %s154 = ssub.s32 128, 128
          %155 = vsyncadd %s149, %s154
          %s156 = smul.addr %s16, 128
          %s157 = scalar_lea.hbm %s0, %s156
          %s159 = sshll.u32 %s152, 4
          %s160 = int_to_ptr.vmem [resolvable:$true] %s159
          %162 = dma.hbm_to_vmem [thread:$0]  %s157, 128, %s160, %s149
        $region28: #{tpu_custom_call.1} parent=23 // pred_fallthru
          _
      $region24: #{tpu_custom_call.1} parent=5 // pred_fallthru
        _
      %p163 = scmp.le.s32.totalorder 1, %s16
      %p164 = scmp.lt.s32.totalorder %s16, 3
      %p165 = pnand %p163, %p164
      %p166 = pneg %p165
      // Predicated region
      $region29: #{tpu_custom_call.1} parent=5 // pred_check
        _
      $region30: #{tpu_custom_call.1} parent=5 // pred_check_branch
        %168 = sbr.rel (%p165) target = $region32
      $region31: #{tpu_custom_call.1} parent=5 // pred_region
        %s169 = ssub.s32 %s16, 1
        %s170 = sand.u32 %s29, 1
        %s171 = scalar_lea.sflag [#allocation3], %s170
        %s172 = sand.u32 %s29, 1
        %s173 = smul.addr %s172, 8
        %s174 = scalar_lea.vmem [#allocation2], %s173
        // Predicated region
        $region33: #{tpu_custom_call.1} parent=31 // pred_check
          %p175 = pneg %p42
        $region34: #{tpu_custom_call.1} parent=31 // pred_check_branch
          %177 = sbr.rel (%p175) target = $region36
        $region35: #{tpu_custom_call.1} parent=31 // pred_region
          %178 = dma.done %s171, 128
        $region36: #{tpu_custom_call.1} parent=31 // pred_fallthru
          _
        // Predicated region
        $region37: #{tpu_custom_call.1} parent=31 // pred_check
          %p179 = pneg %p63
        $region38: #{tpu_custom_call.1} parent=31 // pred_check_branch
          %181 = sbr.rel (%p179) target = $region40
        $region39: #{tpu_custom_call.1} parent=31 // pred_region
          %182 = dma.done [#allocation6], 4096
        $region40: #{tpu_custom_call.1} parent=31 // pred_fallthru
          _
        %s183 = sand.u32 %s29, 1
        %s184 = scalar_lea.sflag [#allocation3], %s183
        %s185 = sand.u32 %s29, 1
        %s186 = smul.addr %s185, 8
        %s187 = scalar_lea.vmem [#allocation2], %s186
        %p188 = pneg %p42
        %p189 = pneg %p39
        %p190 = pneg %p63
        %p191 = pneg %p60
        %p192 = pneg %p84
        %p193 = pneg %p81
        %p194 = pneg %p110
        %p195 = pneg %p107
        %s196 = sand.u32 %s97, 1
        %s197 = scalar_lea.sflag [#allocation4], %s196
        %s198 = sand.u32 %s97, 1
        %s199 = smul.addr %s198, 8
        %s200 = scalar_lea.vmem [#allocation7], %s199
        %v201 = vld [vmem:[%s174] sm:$0xff]
        %v202 = vld [vmem:[#allocation5] sm:$0xff]
        %v203 = vld [vmem:[#allocation5 + $0x8] sm:$0xff]
        %v204 = vld [vmem:[#allocation5 + $0x10] sm:$0xff]
        %v205 = vld [vmem:[#allocation5 + $0x18] sm:$0xff]
        %v206 = vld [vmem:[#allocation5 + $0x20] sm:$0xff]
        %v207 = vld [vmem:[#allocation5 + $0x28] sm:$0xff]
        %v208 = vld [vmem:[#allocation5 + $0x30] sm:$0xff]
        %v209 = vld [vmem:[#allocation5 + $0x38] sm:$0xff]
        %v210 = vld [vmem:[#allocation5 + $0x40] sm:$0xff]
        %v211 = vld [vmem:[#allocation5 + $0x48] sm:$0xff]
        %v212 = vld [vmem:[#allocation5 + $0x50] sm:$0xff]
        %v213 = vld [vmem:[#allocation5 + $0x58] sm:$0xff]
        %v214 = vld [vmem:[#allocation5 + $0x60] sm:$0xff]
        %v215 = vld [vmem:[#allocation5 + $0x68] sm:$0xff]
        %v216 = vld [vmem:[#allocation5 + $0x70] sm:$0xff]
        %v217 = vld [vmem:[#allocation5 + $0x78] sm:$0xff]
        %v218 = vld [vmem:[%s2] sm:$0x1]
        %v220 = vlaneseq
        %v221 = vshrl.u32 %v220, 7
        %v222 = vsub.s32 0, %v221
        %v223 = vrot.slane %v218, %v222
        %225 = vmatprep.subr.mxu0 0.0
        %226 = vmatpush1.msra.mxu0 %v202
        %227 = vmatprep.subr.mxu0 0.0
        %228 = vmatpush1.msra.mxu0 %v203
        %229 = vmatprep.subr.mxu0 0.0
        %230 = vmatpush1.msra.mxu0 %v204
        %231 = vmatprep.subr.mxu0 0.0
        %232 = vmatpush1.msra.mxu0 %v205
        %233 = vmatprep.subr.mxu0 0.0
        %234 = vmatpush1.msra.mxu0 %v206
        %235 = vmatprep.subr.mxu0 0.0
        %236 = vmatpush1.msra.mxu0 %v207
        %237 = vmatprep.subr.mxu0 0.0
        %238 = vmatpush1.msra.mxu0 %v208
        %239 = vmatprep.subr.mxu0 0.0
        %240 = vmatpush1.msra.mxu0 %v209
        %241 = vmatprep.subr.mxu0 0.0
        %242 = vmatpush1.msra.mxu0 %v210
        %243 = vmatprep.subr.mxu0 0.0
        %244 = vmatpush1.msra.mxu0 %v211
        %245 = vmatprep.subr.mxu0 0.0
        %246 = vmatpush1.msra.mxu0 %v212
        %247 = vmatprep.subr.mxu0 0.0
        %248 = vmatpush1.msra.mxu0 %v213
        %249 = vmatprep.subr.mxu0 0.0
        %250 = vmatpush1.msra.mxu0 %v214
        %251 = vmatprep.subr.mxu0 0.0
        %252 = vmatpush1.msra.mxu0 %v215
        %253 = vmatprep.subr.mxu0 0.0
        %254 = vmatpush1.msra.mxu0 %v216
        %255 = vmatprep.subr.mxu0 0.0
        %256 = vmatpush1.msra.mxu0 %v217
        %257 = vmatprep.subr.mxu0 0.0
        %258 = vmatpush1.msra.mxu0 0.0
        %259 = vmatprep.subr.mxu0 0.0
        %260 = vmatpush1.msra.mxu0 0.0
        %261 = vmatprep.subr.mxu0 0.0
        %262 = vmatpush1.msra.mxu0 0.0
        %263 = vmatprep.subr.mxu0 0.0
        %264 = vmatpush1.msra.mxu0 0.0
        %265 = vmatprep.subr.mxu0 0.0
        %266 = vmatpush1.msra.mxu0 0.0
        %267 = vmatprep.subr.mxu0 0.0
        %268 = vmatpush1.msra.mxu0 0.0
        %269 = vmatprep.subr.mxu0 0.0
        %270 = vmatpush1.msra.mxu0 0.0
        %271 = vmatprep.subr.mxu0 0.0
        %272 = vmatpush1.msra.mxu0 0.0
        %273 = vmatprep.subr.mxu0 0.0
        %274 = vmatpush1.msra.mxu0 0.0
        %275 = vmatprep.subr.mxu0 0.0
        %276 = vmatpush1.msra.mxu0 0.0
        %277 = vmatprep.subr.mxu0 0.0
        %278 = vmatpush1.msra.mxu0 0.0
        %279 = vmatprep.subr.mxu0 0.0
        %280 = vmatpush1.msra.mxu0 0.0
        %281 = vmatprep.subr.mxu0 0.0
        %282 = vmatpush1.msra.mxu0 0.0
        %283 = vmatprep.subr.mxu0 0.0
        %284 = vmatpush1.msra.mxu0 0.0
        %285 = vmatprep.subr.mxu0 0.0
        %286 = vmatpush1.msra.mxu0 0.0
        %287 = vmatprep.subr.mxu0 0.0
        %288 = vmatpush1.msra.mxu0 0.0
        %289 = vmatprep.mubr.f32.mxu0 0.0
        %290 = vmatmul.mubr.f32.gmra.mrb[0].mxu0 %v201
        %v291 = vpop.f32.mrb[0].mxu0
        %v292 = vadd.f32 %v223, %v291
        %v293 = vpop.f32.mrb[0].mxu0
        %294 = vdwg.mxu0
        %v295 = vmul.f32 %v292, 1.442695
        %v296 = vpow.pop %v295
        %v297 = vadd.f32 %v296, 1.0
        %v298 = vmul.f32 %v297, %v297
        %v299 = vadd.f32 %v298, 1.0
        %v300 = vrcp.pop %v299
        %v301 = vmul.f32 %v300, 2.0
        %v302 = vsub.f32 1.0, %v301
        %v303 = vmul.f32 %v292, %v302
        %s304 = scalar_lea.vmem [#allocation5], 128
        %v305 = vld [vmem:[%s304] sm:$0xff]
        %v306 = vld [vmem:[%s304 + $0x8] sm:$0xff]
        %v307 = vld [vmem:[%s304 + $0x10] sm:$0xff]
        %v308 = vld [vmem:[%s304 + $0x18] sm:$0xff]
        %v309 = vld [vmem:[%s304 + $0x20] sm:$0xff]
        %v310 = vld [vmem:[%s304 + $0x28] sm:$0xff]
        %v311 = vld [vmem:[%s304 + $0x30] sm:$0xff]
        %v312 = vld [vmem:[%s304 + $0x38] sm:$0xff]
        %v313 = vld [vmem:[%s304 + $0x40] sm:$0xff]
        %v314 = vld [vmem:[%s304 + $0x48] sm:$0xff]
        %v315 = vld [vmem:[%s304 + $0x50] sm:$0xff]
        %v316 = vld [vmem:[%s304 + $0x58] sm:$0xff]
        %v317 = vld [vmem:[%s304 + $0x60] sm:$0xff]
        %v318 = vld [vmem:[%s304 + $0x68] sm:$0xff]
        %v319 = vld [vmem:[%s304 + $0x70] sm:$0xff]
        %v320 = vld [vmem:[%s304 + $0x78] sm:$0xff]
        %s321 = scalar_lea.vmem %s2, 1
        %v322 = vld [vmem:[%s321] sm:$0x1]
        %v324 = vlaneseq
        %v325 = vshrl.u32 %v324, 7
        %v326 = vsub.s32 0, %v325
        %v327 = vrot.slane %v322, %v326
        %329 = vmatprep.subr.mxu0 0.0
        %330 = vmatpush1.msra.mxu0 %v305
        %331 = vmatprep.subr.mxu0 0.0
        %332 = vmatpush1.msra.mxu0 %v306
        %333 = vmatprep.subr.mxu0 0.0
        %334 = vmatpush1.msra.mxu0 %v307
        %335 = vmatprep.subr.mxu0 0.0
        %336 = vmatpush1.msra.mxu0 %v308
        %337 = vmatprep.subr.mxu0 0.0
        %338 = vmatpush1.msra.mxu0 %v309
        %339 = vmatprep.subr.mxu0 0.0
        %340 = vmatpush1.msra.mxu0 %v310
        %341 = vmatprep.subr.mxu0 0.0
        %342 = vmatpush1.msra.mxu0 %v311
        %343 = vmatprep.subr.mxu0 0.0
        %344 = vmatpush1.msra.mxu0 %v312
        %345 = vmatprep.subr.mxu0 0.0
        %346 = vmatpush1.msra.mxu0 %v313
        %347 = vmatprep.subr.mxu0 0.0
        %348 = vmatpush1.msra.mxu0 %v314
        %349 = vmatprep.subr.mxu0 0.0
        %350 = vmatpush1.msra.mxu0 %v315
        %351 = vmatprep.subr.mxu0 0.0
        %352 = vmatpush1.msra.mxu0 %v316
        %353 = vmatprep.subr.mxu0 0.0
        %354 = vmatpush1.msra.mxu0 %v317
        %355 = vmatprep.subr.mxu0 0.0
        %356 = vmatpush1.msra.mxu0 %v318
        %357 = vmatprep.subr.mxu0 0.0
        %358 = vmatpush1.msra.mxu0 %v319
        %359 = vmatprep.subr.mxu0 0.0
        %360 = vmatpush1.msra.mxu0 %v320
        %361 = vmatprep.subr.mxu0 0.0
        %362 = vmatpush1.msra.mxu0 0.0
        %363 = vmatprep.subr.mxu0 0.0
        %364 = vmatpush1.msra.mxu0 0.0
        %365 = vmatprep.subr.mxu0 0.0
        %366 = vmatpush1.msra.mxu0 0.0
        %367 = vmatprep.subr.mxu0 0.0
        %368 = vmatpush1.msra.mxu0 0.0
        %369 = vmatprep.subr.mxu0 0.0
        %370 = vmatpush1.msra.mxu0 0.0
        %371 = vmatprep.subr.mxu0 0.0
        %372 = vmatpush1.msra.mxu0 0.0
        %373 = vmatprep.subr.mxu0 0.0
        %374 = vmatpush1.msra.mxu0 0.0
        %375 = vmatprep.subr.mxu0 0.0
        %376 = vmatpush1.msra.mxu0 0.0
        %377 = vmatprep.subr.mxu0 0.0
        %378 = vmatpush1.msra.mxu0 0.0
        %379 = vmatprep.subr.mxu0 0.0
        %380 = vmatpush1.msra.mxu0 0.0
        %381 = vmatprep.subr.mxu0 0.0
        %382 = vmatpush1.msra.mxu0 0.0
        %383 = vmatprep.subr.mxu0 0.0
        %384 = vmatpush1.msra.mxu0 0.0
        %385 = vmatprep.subr.mxu0 0.0
        %386 = vmatpush1.msra.mxu0 0.0
        %387 = vmatprep.subr.mxu0 0.0
        %388 = vmatpush1.msra.mxu0 0.0
        %389 = vmatprep.subr.mxu0 0.0
        %390 = vmatpush1.msra.mxu0 0.0
        %391 = vmatprep.subr.mxu0 0.0
        %392 = vmatpush1.msra.mxu0 0.0
        %393 = vmatprep.mubr.f32.mxu0 0.0
        %394 = vmatmul.mubr.f32.gmra.mrb[0].mxu0 %v303
        %v395 = vpop.f32.mrb[0].mxu0
        %v396 = vadd.f32 %v327, %v395
        %v397 = vpop.f32.mrb[0].mxu0
        %398 = vdwg.mxu0
        %vm399 = vcmp.ge.f32.partialorder %v396, 0.0
        %v400 = vmul.f32 %v396, 0.1
        %v401 = vsel %vm399, %v396, %v400
        %402 = vst [vmem:[%s200] sm:$0xff] %v401
        %s403 = sand.u32 %s97, 1
        %s404 = scalar_lea.sflag [#allocation4], %s403
        %s405 = sand.u32 %s97, 1
        %s406 = smul.addr %s405, 8
        %s407 = scalar_lea.vmem [#allocation7], %s406
        // Predicated region
        $region41: #{tpu_custom_call.1} parent=31 // pred_check
          %p408 = pneg %p107
        $region42: #{tpu_custom_call.1} parent=31 // pred_check_branch
          %410 = sbr.rel (%p408) target = $region44
        $region43: #{tpu_custom_call.1} parent=31 // pred_region
          %s412 = ssub.s32 128, 128
          %413 = vsyncadd %s404, %s412
          %s414 = smul.addr %s21, 128
          %s415 = scalar_lea.hbm %s3, %s414
          %s417 = sshll.u32 %s407, 4
          %s418 = int_to_ptr.vmem [resolvable:$true] %s417
          %420 = dma.vmem_to_hbm [thread:$0]  %s418, 128, %s415, %s404
        $region44: #{tpu_custom_call.1} parent=31 // pred_fallthru
          _
      $region32: #{tpu_custom_call.1} parent=5 // pred_fallthru
        _
      %p421 = scmp.le.s32.totalorder 2, %s16
      // Predicated region
      $region45: #{tpu_custom_call.1} parent=5 // pred_check
        %p422 = pneg %p421
      $region46: #{tpu_custom_call.1} parent=5 // pred_check_branch
        %424 = sbr.rel (%p422) target = $region48
      $region47: #{tpu_custom_call.1} parent=5 // pred_region
        %s425 = ssub.s32 %s16, 2
        // Predicated region
        $region49: #{tpu_custom_call.1} parent=47 // pred_check
          %p426 = pneg %p113
        $region50: #{tpu_custom_call.1} parent=47 // pred_check_branch
          %428 = sbr.rel (%p426) target = $region52
        $region51: #{tpu_custom_call.1} parent=47 // pred_region
          %s429 = sand.u32 %s98, 1
          %s430 = scalar_lea.sflag [#allocation4], %s429
          %s431 = sand.u32 %s98, 1
          %s432 = smul.addr %s431, 8
          %s433 = scalar_lea.vmem [#allocation7], %s432
          %434 = dma.done %s430, 128
        $region52: #{tpu_custom_call.1} parent=47 // pred_fallthru
          _
      $region48: #{tpu_custom_call.1} parent=5 // pred_fallthru
        _
    $region6: #{tpu_custom_call.1} parent=1 // loop_footer
      %s20 = sadd.s32 1, %s16
    $region7: #{tpu_custom_call.1} parent=1 // loop_footer_branch
      %15 = sbr.rel target = $region3
    $region8: #{tpu_custom_call.1} parent=1 // loop_exit
      _
    %435 = vsyncpa [#allocation3], 1
    %s436 = scalar_lea.sflag [#allocation3], 1
    %437 = vsyncpa %s436, 1
    %438 = vsyncpa [#allocation6], 1
    %439 = vsyncpa [#allocation4], 1
    %s440 = scalar_lea.sflag [#allocation4], 1
    %441 = vsyncpa %s440, 1

</llo_original>
